<compile_context>
chip_gen: v7x
topology: tpu7x:2x2x1
jax: 0.10.0
libtpu: 0.0.40
codegen_flags: <defaults>
</compile_context>

<pallas_src>
import functools

import jax
import jax.numpy as jnp
from jax import lax
from jax.experimental import pallas as pl
from jax.experimental.pallas import tpu as pltpu


def _round_up(x, m):
    return (x + m - 1) // m * m


def _wloss_kernel(out_ref, tgt_ref, w_ref, loss_ref, acc_ref, *, inv_n):
    # out_ref: (TM, C) logits   tgt_ref: (TM, 1) int32   w_ref: (TM, 1) f32
    # loss_ref: (1, 1) f32 output    acc_ref: (1, 1) f32 persistent scratch
    i = pl.program_id(0)

    @pl.when(i == 0)
    def _():
        acc_ref[...] = jnp.zeros_like(acc_ref)

    x = out_ref[...].astype(jnp.float32)          # (TM, C)  (bf16 in HBM is fine)
    tgt = tgt_ref[...]                            # (TM, 1)
    w = w_ref[...]                                # (TM, 1)  (0 on padded rows)

    # -log_softmax(x)[r, tgt[r]] via a single centered pass.
    m = jnp.max(x, axis=1, keepdims=True)                          # (TM, 1)
    xm = x - m                                                     # (TM, C)
    lse = jnp.log(jnp.sum(jnp.exp(xm), axis=1, keepdims=True))     # (TM, 1)
    col = lax.broadcasted_iota(jnp.int32, xm.shape, 1)
    picked = jnp.sum(jnp.where(col == tgt, xm, 0.0), axis=1, keepdims=True)
    negreward = lse - picked                                       # (TM, 1)

    acc_ref[...] += jnp.sum(negreward * w)

    @pl.when(i == pl.num_programs(0) - 1)
    def _():
        loss_ref[...] = acc_ref[...] * inv_n


def wloss(outputs, targets, factor, *, max_tm=512, block_bytes=4 << 20):
    """Pallas implementation of Wloss.forward (non-stochastic branch)."""
    n, c = outputs.shape
    f = factor.shape[0]
    assert n % f == 0, "len(outputs) must be divisible by len(factor)"
    rep = n // f

    # Tiny F-length softmax + per-row weights done once outside the kernel.
    # The O(N*C) hot path (log-softmax, gather, weighted reduction) is in-kernel.
    smax = jax.nn.softmax(factor.astype(jnp.float32), axis=0)      # (F,)
    fweight = jnp.repeat(smax, rep).reshape(n, 1)                  # (N, 1)

    # Row-tile sizing: keep one (double-buffered) logits block well inside the
    # scoped VMEM budget; multiple of 8 sublanes; capped by max_tm and N.
    bytes_per_row = max(1, c * jnp.dtype(outputs.dtype).itemsize)
    tm = max(8, min(max_tm, (block_bytes // bytes_per_row) // 8 * 8))
    tm = min(tm, _round_up(n, 8))
    n_pad = _round_up(n, tm)

    tgt = targets.astype(jnp.int32).reshape(n, 1)
    if n_pad != n:
        # Padded rows: zero logits, target 0, weight 0 -> zero contribution.
        outputs = jnp.pad(outputs, ((0, n_pad - n), (0, 0)))
        tgt = jnp.pad(tgt, ((0, n_pad - n), (0, 0)))
        fweight = jnp.pad(fweight, ((0, n_pad - n), (0, 0)))

    grid = (n_pad // tm,)
    kernel = functools.partial(_wloss_kernel, inv_n=float(1.0 / n))
    loss = pl.pallas_call(
        kernel,
        out_shape=jax.ShapeDtypeStruct((1, 1), jnp.float32),
        grid_spec=pltpu.PrefetchScalarGridSpec(
            num_scalar_prefetch=0,
            grid=grid,
            in_specs=[
                pl.BlockSpec((tm, c), lambda i: (i, 0)),   # logits tile
                pl.BlockSpec((tm, 1), lambda i: (i, 0)),   # targets tile
                pl.BlockSpec((tm, 1), lambda i: (i, 0)),   # per-row weights tile
            ],
            out_specs=pl.BlockSpec((1, 1), lambda i: (0, 0)),
            scratch_shapes=[pltpu.VMEM((1, 1), jnp.float32)],
        ),
        compiler_params=pltpu.CompilerParams(
            # Grid axis carries the scalar accumulator -> reduction axis.
            dimension_semantics=("arbitrary",),
            vmem_limit_bytes=64 << 20,
        ),
    )(outputs, tgt, fweight)
    return loss[0, 0]


def wloss_ref(outputs, targets, factor):
    """Pure-JAX reference mirroring the PyTorch module."""
    n = outputs.shape[0]
    f = factor.shape[0]
    smax = jax.nn.softmax(factor.astype(jnp.float32), axis=0)
    fweight = jnp.repeat(smax, n // f)
    logp = jax.nn.log_softmax(outputs.astype(jnp.float32), axis=1)
    negreward = -logp[jnp.arange(n), targets]
    return jnp.mean(negreward * fweight)


if __name__ == "__main__":
    key = jax.random.PRNGKey(0)
    k1, k2, k3 = jax.random.split(key, 3)

    N, C, F = 8, 16, 4  # batch, num classes, factor length (N % F == 0)

    outputs = jax.random.normal(k1, (N, C), dtype=jnp.float32)   # logits
    targets = jax.random.randint(k2, (N,), 0, C, dtype=jnp.int32)
    factor = jax.random.normal(k3, (F,), dtype=jnp.float32)      # nn.Parameter-like

    loss = wloss(outputs, targets, factor)
    jax.block_until_ready(loss)

    ref = wloss_ref(outputs, targets, factor)
    assert jnp.allclose(loss, ref, rtol=1e-5, atol=1e-5), (loss, ref)

    print("KERNEL_OK")
</pallas_src>

<mosaic_0001>
module attributes {stable_mosaic.version = 11 : i64} {
  func.func @_wloss_kernel(%arg0: i32, %arg1: memref<8x16xf32, #tpu.memory_space<vmem>>, %arg2: memref<8x1xi32, #tpu.memory_space<vmem>>, %arg3: memref<8x1xf32, #tpu.memory_space<vmem>>, %arg4: memref<1x1xf32, #tpu.memory_space<vmem>>, %arg5: memref<1x1xf32, #tpu.memory_space<vmem>>) attributes {dimension_semantics = [#tpu.dimension_semantics<arbitrary>], iteration_bounds = array<i64: 1>, scalar_prefetch = 0 : i64, scratch_operands = 1 : i64, tpu.core_type = #tpu.core_type<tc>, window_params = [{transform_indices = @transform_0, window_bounds = array<i64: 8, 16>}, {transform_indices = @transform_1, window_bounds = array<i64: 8, 1>}, {transform_indices = @transform_2, window_bounds = array<i64: 8, 1>}, {pipeline_mode = #tpu.pipeline_mode<synchronous>, transform_indices = @transform_3, window_bounds = array<i64: 1, 1>}]} {
    %c0_i32 = arith.constant 0 : i32
    %0 = arith.cmpi eq, %arg0, %c0_i32 : i32
    %1 = arith.extui %0 : i1 to i32
    %c0_i32_0 = arith.constant 0 : i32
    %2 = arith.cmpi ne, %1, %c0_i32_0 : i32
    scf.if %2 {
      %cst_16 = arith.constant 0.000000e+00 : f32
      %34 = vector.broadcast %cst_16 : f32 to vector<1x1xf32>
      %c0_17 = arith.constant 0 : index
      %c0_18 = arith.constant 0 : index
      %35 = vector.load %arg5[%c0_17, %c0_18] : memref<1x1xf32, #tpu.memory_space<vmem>>, vector<1x1xf32>
      tpu.vector_store %arg5[%c0_17, %c0_18], %34 {strides = array<i32>} : memref<1x1xf32, #tpu.memory_space<vmem>>, vector<1x1xf32>,
    } else {
    }
    %c0 = arith.constant 0 : index
    %c0_1 = arith.constant 0 : index
    %3 = vector.load %arg1[%c0, %c0_1] : memref<8x16xf32, #tpu.memory_space<vmem>>, vector<8x16xf32>
    %c0_2 = arith.constant 0 : index
    %c0_3 = arith.constant 0 : index
    %4 = vector.load %arg2[%c0_2, %c0_3] : memref<8x1xi32, #tpu.memory_space<vmem>>, vector<8x1xi32>
    %c0_4 = arith.constant 0 : index
    %c0_5 = arith.constant 0 : index
    %5 = vector.load %arg3[%c0_4, %c0_5] : memref<8x1xf32, #tpu.memory_space<vmem>>, vector<8x1xf32>
    %cst = arith.constant dense<0xFF800000> : vector<8xf32>
    %6 = vector.multi_reduction <maximumf>, %3, %cst [1] : vector<8x16xf32> to vector<8xf32>
    %7 = vector.shape_cast %6 : vector<8xf32> to vector<8x1xf32>
    %8 = vector.broadcast %7 : vector<8x1xf32> to vector<8x16xf32>
    %9 = arith.subf %3, %8 : vector<8x16xf32>
    %10 = math.exp %9 : vector<8x16xf32>
    %cst_6 = arith.constant dense<0.000000e+00> : vector<8xf32>
    %11 = vector.multi_reduction <add>, %10, %cst_6 [1] : vector<8x16xf32> to vector<8xf32>
    %12 = vector.shape_cast %11 : vector<8xf32> to vector<8x1xf32>
    %13 = math.log %12 : vector<8x1xf32>
    %14 = tpu.iota {dimensions = array<i32: 1>} : vector<8x16xi32>
    %15 = vector.broadcast %4 : vector<8x1xi32> to vector<8x16xi32>
    %16 = arith.cmpi eq, %14, %15 : vector<8x16xi32>
    %cst_7 = arith.constant 0.000000e+00 : f32
    %17 = vector.broadcast %cst_7 : f32 to vector<8x16xf32>
    %18 = arith.select %16, %9, %17 : vector<8x16xi1>, vector<8x16xf32>
    %cst_8 = arith.constant dense<0.000000e+00> : vector<8xf32>
    %19 = vector.multi_reduction <add>, %18, %cst_8 [1] : vector<8x16xf32> to vector<8xf32>
    %20 = vector.shape_cast %19 : vector<8xf32> to vector<8x1xf32>
    %21 = arith.subf %13, %20 : vector<8x1xf32>
    %c0_9 = arith.constant 0 : index
    %c0_10 = arith.constant 0 : index
    %22 = vector.load %arg5[%c0_9, %c0_10] : memref<1x1xf32, #tpu.memory_space<vmem>>, vector<1x1xf32>
    %23 = arith.mulf %21, %5 : vector<8x1xf32>
    %24 = vector.shape_cast %23 : vector<8x1xf32> to vector<1x8x1xf32>
    %cst_11 = arith.constant dense<0.000000e+00> : vector<1xf32>
    %25 = vector.multi_reduction <add>, %24, %cst_11 [1, 2] : vector<1x8x1xf32> to vector<1xf32>
    %26 = vector.shape_cast %25 : vector<1xf32> to vector<1x1x1xf32>
    %27 = vector.extract %26[0, 0, 0] : f32 from vector<1x1x1xf32>
    %28 = vector.broadcast %27 : f32 to vector<1x1xf32>
    %29 = arith.addf %22, %28 : vector<1x1xf32>
    %c0_12 = arith.constant 0 : index
    %c0_13 = arith.constant 0 : index
    %30 = vector.load %arg5[%c0_12, %c0_13] : memref<1x1xf32, #tpu.memory_space<vmem>>, vector<1x1xf32>
    tpu.vector_store %arg5[%c0_12, %c0_13], %29 {strides = array<i32>} : memref<1x1xf32, #tpu.memory_space<vmem>>, vector<1x1xf32>,
    %c0_i32_14 = arith.constant 0 : i32
    %31 = arith.cmpi eq, %arg0, %c0_i32_14 : i32
    %32 = arith.extui %31 : i1 to i32
    %c0_i32_15 = arith.constant 0 : i32
    %33 = arith.cmpi ne, %32, %c0_i32_15 : i32
    scf.if %33 {
      %c0_16 = arith.constant 0 : index
      %c0_17 = arith.constant 0 : index
      %34 = vector.load %arg5[%c0_16, %c0_17] : memref<1x1xf32, #tpu.memory_space<vmem>>, vector<1x1xf32>
      %cst_18 = arith.constant 1.250000e-01 : f32
      %35 = vector.broadcast %cst_18 : f32 to vector<1x1xf32>
      %36 = arith.mulf %34, %35 : vector<1x1xf32>
      %c0_19 = arith.constant 0 : index
      %c0_20 = arith.constant 0 : index
      %37 = vector.load %arg4[%c0_19, %c0_20] : memref<1x1xf32, #tpu.memory_space<vmem>>, vector<1x1xf32>
      tpu.vector_store %arg4[%c0_19, %c0_20], %36 {strides = array<i32>} : memref<1x1xf32, #tpu.memory_space<vmem>>, vector<1x1xf32>,
    } else {
    }
    return
  }
  func.func @transform_0(%arg0: i32) -> (i32, i32) {
    %c0_i32 = arith.constant 0 : i32
    %c0_i32_0 = arith.constant 0 : i32
    return %arg0, %c0_i32 : i32, i32
  }
  func.func @transform_1(%arg0: i32) -> (i32, i32) {
    %c0_i32 = arith.constant 0 : i32
    %c0_i32_0 = arith.constant 0 : i32
    return %arg0, %c0_i32 : i32, i32
  }
  func.func @transform_2(%arg0: i32) -> (i32, i32) {
    %c0_i32 = arith.constant 0 : i32
    %c0_i32_0 = arith.constant 0 : i32
    return %arg0, %c0_i32 : i32, i32
  }
  func.func @transform_3(%arg0: i32) -> (i32, i32) {
    %c0_i32 = arith.constant 0 : i32
    %c0_i32_0 = arith.constant 0 : i32
    %c0_i32_1 = arith.constant 0 : i32
    return %c0_i32, %c0_i32_0 : i32, i32
  }
}

</mosaic_0001>

<llo_original>
// kernel: tpu_custom_call.1
$region0: #{tpu_custom_call.1}
  #allocation0 [shape = 'u32[]', space=smem, size = 0x4, offset = 0x4, fixed_abs, tag = 'smem constant byte address 0x4 - core index']
  #allocation1 [shape = 'u32[144,128]{1,0:T(1,128)}', space=vmem, size = 0x12000, scoped, tag = 'internal scratch']
  #allocation2 [shape = 'f32[1,1]{1,0:T(1,128)}', space=vmem, size = 0x200, scoped, tag = 'scratch operand']
  %s0 = inlined_call_operand.hbm [shape: f32[8,16], index: 0, kind: input, shape index: {}]
  %s1 = inlined_call_operand.hbm [shape: s32[8,1], index: 1, kind: input, shape index: {}]
  %s2 = inlined_call_operand.hbm [shape: f32[8,1], index: 2, kind: input, shape index: {}]
  %s3 = inlined_call_operand.hbm [shape: f32[1,1], index: 3, kind: output, shape index: {}]
  %s4 = sld [smem:[#allocation0]]
  $region42: #{tpu_custom_call.1} parent=0
    _
  %s6 = ssub.s32 1, %s4
  %s7 = scalar_select 0, %s6, %s4
  $region1: #{tpu_custom_call.1} parent=0
    #allocation3 [shape = 'u8[4096]{0}', space=vmem, size = 0x1000, scoped, tag = 'input window, operand 0, single buffered']
    #allocation4 [shape = 's32[1]{0}', space=sflag, size = 0x4, scoped, tag = 'scoped memory for tpu_custom_call.1']
    #allocation5 [shape = 's32[1]{0}', space=sflag, size = 0x4, scoped, tag = 'scoped memory for tpu_custom_call.1']
    #allocation6 [shape = 'u8[4096]{0}', space=vmem, size = 0x1000, scoped, tag = 'input window, operand 1, single buffered']
    #allocation7 [shape = 's32[1]{0}', space=sflag, size = 0x4, scoped, tag = 'scoped memory for tpu_custom_call.1']
    #allocation8 [shape = 'u8[4096]{0}', space=vmem, size = 0x1000, scoped, tag = 'input window, operand 2, single buffered']
    #allocation9 [shape = 'u8[512]{0}', space=vmem, size = 0x400, scoped, tag = 'output window, operand 0, single buffered']
    %8 = vsyncpa [#allocation4], 0
    %9 = vsyncpa [#allocation7], 0
    %10 = vsyncpa [#allocation5], 0
    // Predicated region
    $region2: #{tpu_custom_call.1} parent=1 // pred_check
      _
    $region3: #{tpu_custom_call.1} parent=1 // pred_check_branch
      %12 = sbr.rel (0) target = $region5
    $region4: #{tpu_custom_call.1} parent=1 // pred_region
      %s14 = ssub.s32 128, 128
      %15 = vsyncadd [#allocation4], %s14
      %s17 = sshll.u32 [#allocation3], 4
      %s18 = int_to_ptr.vmem [resolvable:$true] %s17
      %20 = dma.hbm_to_vmem [thread:$0]  %s0, 128, %s18, [#allocation4]
    $region5: #{tpu_custom_call.1} parent=1 // pred_fallthru
      _
    // Predicated region
    $region6: #{tpu_custom_call.1} parent=1 // pred_check
      _
    $region7: #{tpu_custom_call.1} parent=1 // pred_check_branch
      %22 = sbr.rel (0) target = $region9
    $region8: #{tpu_custom_call.1} parent=1 // pred_region
      %s24 = ssub.s32 128, 128
      %25 = vsyncadd [#allocation7], %s24
      %s27 = sshll.u32 [#allocation6], 4
      %s28 = int_to_ptr.vmem [resolvable:$true] %s27
      %30 = dma.hbm_to_vmem [thread:$0]  %s1, 128, %s28, [#allocation7]
    $region9: #{tpu_custom_call.1} parent=1 // pred_fallthru
      _
    // Predicated region
    $region10: #{tpu_custom_call.1} parent=1 // pred_check
      _
    $region11: #{tpu_custom_call.1} parent=1 // pred_check_branch
      %32 = sbr.rel (0) target = $region13
    $region12: #{tpu_custom_call.1} parent=1 // pred_region
      %s34 = ssub.s32 128, 128
      %35 = vsyncadd [#allocation7], %s34
      %s37 = sshll.u32 [#allocation8], 4
      %s38 = int_to_ptr.vmem [resolvable:$true] %s37
      %40 = dma.hbm_to_vmem [thread:$0]  %s2, 128, %s38, [#allocation7]
    $region13: #{tpu_custom_call.1} parent=1 // pred_fallthru
      _
    // Predicated region
    $region14: #{tpu_custom_call.1} parent=1 // pred_check
      _
    $region15: #{tpu_custom_call.1} parent=1 // pred_check_branch
      %42 = sbr.rel (0) target = $region17
    $region16: #{tpu_custom_call.1} parent=1 // pred_region
      %43 = dma.done [#allocation4], 128
    $region17: #{tpu_custom_call.1} parent=1 // pred_fallthru
      _
    // Predicated region
    $region18: #{tpu_custom_call.1} parent=1 // pred_check
      _
    $region19: #{tpu_custom_call.1} parent=1 // pred_check_branch
      %45 = sbr.rel (0) target = $region21
    $region20: #{tpu_custom_call.1} parent=1 // pred_region
      %46 = dma.done [#allocation7], 128
    $region21: #{tpu_custom_call.1} parent=1 // pred_fallthru
      _
    // Predicated region
    $region22: #{tpu_custom_call.1} parent=1 // pred_check
      _
    $region23: #{tpu_custom_call.1} parent=1 // pred_check_branch
      %48 = sbr.rel (0) target = $region25
    $region24: #{tpu_custom_call.1} parent=1 // pred_region
      %49 = dma.done [#allocation7], 128
    $region25: #{tpu_custom_call.1} parent=1 // pred_fallthru
      _
    %p50 = scmp.eq.s32.totalorder 0, 0
    // Predicated region
    $region26: #{tpu_custom_call.1} parent=1 // pred_check
      %p51 = pneg %p50
    $region27: #{tpu_custom_call.1} parent=1 // pred_check_branch
      %53 = sbr.rel (%p51) target = $region29
    $region28: #{tpu_custom_call.1} parent=1 // pred_region
      %vm54 = vcmask 0
      %55 = vst.msk [vmem:[#allocation2] sm:$0x1] %vm54, 0.0
    $region29: #{tpu_custom_call.1} parent=1 // pred_fallthru
      _
    %v56 = vld [vmem:[#allocation3] sm:$0xff]
    %v57 = vld [vmem:[#allocation6] sm:$0xff]
    %v58 = vld [vmem:[#allocation8] sm:$0xff]
    %vm59 = vcmask 130048
    %v60 = vsel %vm59, %v56, -inf
    %61 = vmax.xlane.f32.xlu0 %v60
    %v62 = vpop.xlane.xlu0 %61
    %v63 = vsub.f32 %v56, %v62
    %v64 = vmul.f32 %v63, 1.442695
    %v65 = vpow.pop %v64
    %v66 = vsel %vm59, %v65, 0.0
    %67 = vadd.xlane.f32.xlu0 %v66
    %v68 = vpop.xlane.xlu0 %67
    %v69 = vlog2.pop %v68
    %v70 = vmul.f32 %v69, 0.6931472
    %v71 = vlaneseq
    %v72 = vand.u32 %v71, 127
    %73 = vset.pattern.permute.xlu0 0
    %74 = vperm.xlu0 %73, %v57
    %v75 = vpop.permute.xlu0 %74
    %vm76 = vcmp.eq.s32.totalorder %v72, %v75
    %v77 = vsel %vm76, %v63, 0.0
    %v78 = vsel %vm59, %v77, 0.0
    %79 = vadd.xlane.f32.xlu0 %v78
    %v80 = vpop.xlane.xlu0 %79
    %v81 = vsub.f32 %v70, %v80
    %v82 = vld [vmem:[#allocation2] sm:$0x1]
    %v83 = vmul.f32 %v81, %v58
    %vm84 = vcmask 7168
    %v85 = vsel %vm84, %v83, 0.0
    %86 = vadd.xlane.f32.xlu0 %v85
    %v87 = vpop.xlane.xlu0 %86
    %v88 = vrot.slane %v87, 4
    %v89 = vadd.f32 %v87, %v88
    %v90 = vrot.slane %v89, 2
    %v91 = vadd.f32 %v89, %v90
    %v92 = vrot.slane %v91, 1
    %v93 = vadd.f32 %v91, %v92
    %s94 = vtos %v93
    %v95 = vstv %s94
    %v96 = vadd.f32 %v82, %v95
    %vm97 = vcmask 0
    %98 = vst.msk [vmem:[#allocation2] sm:$0x1] %vm97, %v96
    // Predicated region
    $region30: #{tpu_custom_call.1} parent=1 // pred_check
      %p99 = pneg %p50
    $region31: #{tpu_custom_call.1} parent=1 // pred_check_branch
      %101 = sbr.rel (%p99) target = $region33
    $region32: #{tpu_custom_call.1} parent=1 // pred_region
      %v102 = vld [vmem:[#allocation2] sm:$0x1]
      %v103 = vmul.f32 %v102, 0.125
      %104 = vst.msk [vmem:[#allocation9] sm:$0x1] %vm97, %v103
    $region33: #{tpu_custom_call.1} parent=1 // pred_fallthru
      _
    // Predicated region
    $region34: #{tpu_custom_call.1} parent=1 // pred_check
      _
    $region35: #{tpu_custom_call.1} parent=1 // pred_check_branch
      %106 = sbr.rel (0) target = $region37
    $region36: #{tpu_custom_call.1} parent=1 // pred_region
      %s108 = ssub.s32 16, 16
      %109 = vsyncadd [#allocation5], %s108
      %s111 = sshll.u32 [#allocation9], 4
      %s112 = int_to_ptr.vmem [resolvable:$true] %s111
      %114 = dma.vmem_to_hbm [thread:$0]  %s112, 16, %s3, [#allocation5]
    $region37: #{tpu_custom_call.1} parent=1 // pred_fallthru
      _
    // Predicated region
    $region38: #{tpu_custom_call.1} parent=1 // pred_check
      _
    $region39: #{tpu_custom_call.1} parent=1 // pred_check_branch
      %116 = sbr.rel (0) target = $region41
    $region40: #{tpu_custom_call.1} parent=1 // pred_region
      %117 = dma.done [#allocation5], 16
    $region41: #{tpu_custom_call.1} parent=1 // pred_fallthru
      _
    %118 = vsyncpa [#allocation4], 1
    %119 = vsyncpa [#allocation7], 1
    %120 = vsyncpa [#allocation5], 1

</llo_original>
